<compile_context>
chip_gen: v7x
topology: tpu7x:2x2x1
jax: 0.10.0
libtpu: 0.0.40
codegen_flags: <defaults>
</compile_context>

<pallas_src>
import functools

import jax
import jax.numpy as jnp
from jax.experimental import pallas as pl
from jax.experimental.pallas import tpu as pltpu


def _dice_loss_kernel(data_ref, label_ref, out_ref, *, hw, merged):
    # merged=True : data_ref is (B, 2*HW) lane-dense (channel0 | channel1)
    # merged=False: data_ref is (B, 2, HW)  (fallback for HW % 128 != 0)
    # label_ref   : (B, HW)
    # out_ref     : (B, 1)  per-sample dice (dice0 + dice1)
    if merged:
        d0 = data_ref[:, :hw].astype(jnp.float32)      # (B, HW) channel 0
        d1 = data_ref[:, hw:].astype(jnp.float32)      # (B, HW) channel 1
    else:
        d0 = data_ref[:, 0, :].astype(jnp.float32)
        d1 = data_ref[:, 1, :].astype(jnp.float32)
    lab = label_ref[...].astype(jnp.float32)            # (B, HW)
    inv_lab = jnp.abs(1.0 - lab)

    sum_d0 = jnp.sum(d0, axis=-1, keepdims=True)        # (B, 1)
    sum_d1 = jnp.sum(d1, axis=-1, keepdims=True)
    sum_l = jnp.sum(lab, axis=-1, keepdims=True)
    sum_il = jnp.sum(inv_lab, axis=-1, keepdims=True)
    inter0 = jnp.sum(d0 * inv_lab, axis=-1, keepdims=True)
    inter1 = jnp.sum(d1 * lab, axis=-1, keepdims=True)

    dice0 = 1.0 - (2.0 * inter0 + 1.0) / (sum_d0 + sum_il + 1.0)
    dice1 = 1.0 - (2.0 * inter1 + 1.0) / (sum_d1 + sum_l + 1.0)
    out_ref[...] = dice0 + dice1                         # (B, 1)


def _vmem_budget_bytes():
    """Generation-aware scoped-VMEM request (v5e/v6e ~64 MiB, v7x ~42 MiB)."""
    cap = None
    try:
        cap = getattr(pltpu.get_tpu_info(), "vmem_capacity_bytes", None)
    except Exception:
        cap = None
    if not cap:
        cap = 64 * 1024 * 1024                 # assume smallest per-core VMEM
    return min(64 * 1024 * 1024, (2 * cap) // 3)


def _choose_batch_tile(n, per_sample_bytes, align, target_bytes):
    """Biggest sublane-aligned batch tile with ~target_bytes of inputs/step."""
    b = max(1, int(target_bytes) // max(1, per_sample_bytes))
    if b < n:
        b = max(align, (b // align) * align)
        if b < n:
            return b
    # Whole batch fits in one step: split into two balanced, aligned blocks when
    # the halves are still >= 1 MiB so both v7x TensorCores get work (the extra
    # grid step is ~free on single-core v5e/v6e).
    half = -(-n // 2)
    half = -(-half // align) * align
    if half < n and half * per_sample_bytes >= (1 << 20):
        return half
    return n


def dice_loss_pallas(data, label):
    """data: (N, 2, H, W), label: (N, H, W) -> scalar f32 (mean dice loss)."""
    N, C, H, W = data.shape
    assert C == 2
    assert label.shape == (N, H, W)
    HW = H * W

    # Lane-dense layout: merging C into the lane axis is a free contiguous
    # reshape in HBM and keeps the kernel's channel slices 128-aligned.
    merged = (HW % 128) == 0
    data2 = data.reshape(N, C * HW) if merged else data.reshape(N, C, HW)
    label2 = label.reshape(N, HW)

    d_item = jnp.dtype(data2.dtype).itemsize
    l_item = jnp.dtype(label2.dtype).itemsize
    align = max(8, 32 // d_item, 32 // l_item)    # sublane packing of narrowest dtype
    per_sample_bytes = C * HW * d_item + HW * l_item

    vmem_limit = _vmem_budget_bytes()
    target_bytes = min(16 * 1024 * 1024, vmem_limit // 3)  # x2 pipeline buffers fit
    # TODO(synk): for very large images (align samples already exceed the per-step
    # budget) add a second "arbitrary" grid axis over HW with partial-sum scratch.
    B = _choose_batch_tile(N, per_sample_bytes, align, target_bytes)
    num_blocks = pl.cdiv(N, B)        # last block may overhang N; DMAs clamp,
                                      # so no jnp.pad copy of the inputs.

    if merged:
        data_spec = pl.BlockSpec((B, C * HW), lambda i: (i, 0))
    else:
        data_spec = pl.BlockSpec((B, C, HW), lambda i: (i, 0, 0))

    kernel = functools.partial(_dice_loss_kernel, hw=HW, merged=merged)
    bytes_accessed = data2.size * d_item + label2.size * l_item + N * 4

    per_sample_dice = pl.pallas_call(
        kernel,
        out_shape=jax.ShapeDtypeStruct((N, 1), jnp.float32),
        grid_spec=pltpu.PrefetchScalarGridSpec(
            num_scalar_prefetch=0,
            grid=(num_blocks,),
            in_specs=[data_spec,
                      pl.BlockSpec((B, HW), lambda i: (i, 0))],
            out_specs=pl.BlockSpec((B, 1), lambda i: (i, 0)),
        ),
        compiler_params=pltpu.CompilerParams(
            dimension_semantics=("parallel",),     # independent per-block outputs
            vmem_limit_bytes=int(vmem_limit),
        ),
        cost_estimate=pl.CostEstimate(
            flops=10 * N * HW,
            transcendentals=0,
            bytes_accessed=int(bytes_accessed),
        ),
    )(data2, label2)

    # Tiny epilogue: mean of the N per-sample dice values.
    return jnp.sum(per_sample_dice[:, 0]) / jnp.float32(N)


def _dice_loss_ref(data, label):
    # Pure-JAX reference matching the PyTorch forward exactly.
    n = data.shape[0]
    total = 0.0
    for i in range(n):
        lab = label[i].astype(jnp.float32)
        inv_lab = jnp.abs(1.0 - lab)
        m1 = data[i, 0].astype(jnp.float32).reshape(-1)
        m2 = inv_lab.reshape(-1)
        m11 = data[i, 1].astype(jnp.float32).reshape(-1)
        m22 = lab.reshape(-1)
        dice = 0.0
        dice += 1.0 - (2.0 * jnp.sum(m1 * m2) + 1.0) / (jnp.sum(m1) + jnp.sum(m2) + 1.0)
        dice += 1.0 - (2.0 * jnp.sum(m11 * m22) + 1.0) / (jnp.sum(m11) + jnp.sum(m22) + 1.0)
        total = total + dice
    return total / n


if __name__ == "__main__":
    key = jax.random.PRNGKey(0)
    k1, k2 = jax.random.split(key)

    N, C, H, W = 2, 2, 16, 16
    # data: softmax-like probabilities per pixel over the 2 channels
    logits = jax.random.normal(k1, (N, C, H, W), dtype=jnp.float32)
    data = jax.nn.softmax(logits, axis=1)
    # label: binary mask
    label = jax.random.bernoulli(k2, 0.5, (N, H, W)).astype(jnp.float32)

    out = jax.block_until_ready(dice_loss_pallas(data, label))
    ref = jax.block_until_ready(_dice_loss_ref(data, label))
    assert jnp.allclose(out, ref, rtol=1e-5, atol=1e-5), (out, ref)
    print("KERNEL_OK")
</pallas_src>

<mosaic_0001>
module attributes {stable_mosaic.version = 11 : i64} {
  func.func @_dice_loss_kernel(%arg0: i32, %arg1: memref<2x512xf32, #tpu.memory_space<vmem>>, %arg2: memref<2x256xf32, #tpu.memory_space<vmem>>, %arg3: memref<2x1xf32, #tpu.memory_space<vmem>>) attributes {dimension_semantics = [#tpu.dimension_semantics<parallel>], iteration_bounds = array<i64: 1>, scalar_prefetch = 0 : i64, scratch_operands = 0 : i64, tpu.core_type = #tpu.core_type<tc>, window_params = [{transform_indices = @transform_0, window_bounds = array<i64: 2, 512>}, {transform_indices = @transform_1, window_bounds = array<i64: 2, 256>}, {transform_indices = @transform_2, window_bounds = array<i64: 2, 1>}]} {
    %c0 = arith.constant 0 : index
    %c0_0 = arith.constant 0 : index
    %0 = vector.load %arg1[%c0, %c0_0] : memref<2x512xf32, #tpu.memory_space<vmem>>, vector<2x256xf32>
    %c0_1 = arith.constant 0 : index
    %c256 = arith.constant 256 : index
    %1 = vector.load %arg1[%c0_1, %c256] : memref<2x512xf32, #tpu.memory_space<vmem>>, vector<2x256xf32>
    %c0_2 = arith.constant 0 : index
    %c0_3 = arith.constant 0 : index
    %2 = vector.load %arg2[%c0_2, %c0_3] : memref<2x256xf32, #tpu.memory_space<vmem>>, vector<2x256xf32>
    %cst = arith.constant 1.000000e+00 : f32
    %3 = vector.broadcast %cst : f32 to vector<2x256xf32>
    %4 = arith.subf %3, %2 : vector<2x256xf32>
    %5 = math.absf %4 : vector<2x256xf32>
    %cst_4 = arith.constant dense<0.000000e+00> : vector<2xf32>
    %6 = vector.multi_reduction <add>, %0, %cst_4 [1] : vector<2x256xf32> to vector<2xf32>
    %7 = vector.shape_cast %6 : vector<2xf32> to vector<2x1xf32>
    %cst_5 = arith.constant dense<0.000000e+00> : vector<2xf32>
    %8 = vector.multi_reduction <add>, %1, %cst_5 [1] : vector<2x256xf32> to vector<2xf32>
    %9 = vector.shape_cast %8 : vector<2xf32> to vector<2x1xf32>
    %cst_6 = arith.constant dense<0.000000e+00> : vector<2xf32>
    %10 = vector.multi_reduction <add>, %2, %cst_6 [1] : vector<2x256xf32> to vector<2xf32>
    %11 = vector.shape_cast %10 : vector<2xf32> to vector<2x1xf32>
    %cst_7 = arith.constant dense<0.000000e+00> : vector<2xf32>
    %12 = vector.multi_reduction <add>, %5, %cst_7 [1] : vector<2x256xf32> to vector<2xf32>
    %13 = vector.shape_cast %12 : vector<2xf32> to vector<2x1xf32>
    %14 = arith.mulf %0, %5 : vector<2x256xf32>
    %cst_8 = arith.constant dense<0.000000e+00> : vector<2xf32>
    %15 = vector.multi_reduction <add>, %14, %cst_8 [1] : vector<2x256xf32> to vector<2xf32>
    %16 = vector.shape_cast %15 : vector<2xf32> to vector<2x1xf32>
    %17 = arith.mulf %1, %2 : vector<2x256xf32>
    %cst_9 = arith.constant dense<0.000000e+00> : vector<2xf32>
    %18 = vector.multi_reduction <add>, %17, %cst_9 [1] : vector<2x256xf32> to vector<2xf32>
    %19 = vector.shape_cast %18 : vector<2xf32> to vector<2x1xf32>
    %cst_10 = arith.constant 2.000000e+00 : f32
    %20 = vector.broadcast %cst_10 : f32 to vector<2x1xf32>
    %21 = arith.mulf %20, %16 : vector<2x1xf32>
    %cst_11 = arith.constant 1.000000e+00 : f32
    %22 = vector.broadcast %cst_11 : f32 to vector<2x1xf32>
    %23 = arith.addf %21, %22 : vector<2x1xf32>
    %24 = arith.addf %7, %13 : vector<2x1xf32>
    %cst_12 = arith.constant 1.000000e+00 : f32
    %25 = vector.broadcast %cst_12 : f32 to vector<2x1xf32>
    %26 = arith.addf %24, %25 : vector<2x1xf32>
    %27 = arith.divf %23, %26 : vector<2x1xf32>
    %cst_13 = arith.constant 1.000000e+00 : f32
    %28 = vector.broadcast %cst_13 : f32 to vector<2x1xf32>
    %29 = arith.subf %28, %27 : vector<2x1xf32>
    %cst_14 = arith.constant 2.000000e+00 : f32
    %30 = vector.broadcast %cst_14 : f32 to vector<2x1xf32>
    %31 = arith.mulf %30, %19 : vector<2x1xf32>
    %cst_15 = arith.constant 1.000000e+00 : f32
    %32 = vector.broadcast %cst_15 : f32 to vector<2x1xf32>
    %33 = arith.addf %31, %32 : vector<2x1xf32>
    %34 = arith.addf %9, %11 : vector<2x1xf32>
    %cst_16 = arith.constant 1.000000e+00 : f32
    %35 = vector.broadcast %cst_16 : f32 to vector<2x1xf32>
    %36 = arith.addf %34, %35 : vector<2x1xf32>
    %37 = arith.divf %33, %36 : vector<2x1xf32>
    %cst_17 = arith.constant 1.000000e+00 : f32
    %38 = vector.broadcast %cst_17 : f32 to vector<2x1xf32>
    %39 = arith.subf %38, %37 : vector<2x1xf32>
    %40 = arith.addf %29, %39 : vector<2x1xf32>
    %c0_18 = arith.constant 0 : index
    %c0_19 = arith.constant 0 : index
    %41 = vector.load %arg3[%c0_18, %c0_19] : memref<2x1xf32, #tpu.memory_space<vmem>>, vector<2x1xf32>
    tpu.vector_store %arg3[%c0_18, %c0_19], %40 {strides = array<i32>} : memref<2x1xf32, #tpu.memory_space<vmem>>, vector<2x1xf32>,
    return
  }
  func.func @transform_0(%arg0: i32) -> (i32, i32) {
    %c0_i32 = arith.constant 0 : i32
    %c0_i32_0 = arith.constant 0 : i32
    return %arg0, %c0_i32 : i32, i32
  }
  func.func @transform_1(%arg0: i32) -> (i32, i32) {
    %c0_i32 = arith.constant 0 : i32
    %c0_i32_0 = arith.constant 0 : i32
    return %arg0, %c0_i32 : i32, i32
  }
  func.func @transform_2(%arg0: i32) -> (i32, i32) {
    %c0_i32 = arith.constant 0 : i32
    %c0_i32_0 = arith.constant 0 : i32
    return %arg0, %c0_i32 : i32, i32
  }
}

</mosaic_0001>

<llo_original>
// kernel: tpu_custom_call.1
$region0: #{tpu_custom_call.1}
  #allocation0 [shape = 'u32[]', space=smem, size = 0x4, offset = 0x4, fixed_abs, tag = 'smem constant byte address 0x4 - core index']
  #allocation1 [shape = 'u32[144,128]{1,0:T(1,128)}', space=vmem, size = 0x12000, scoped, tag = 'internal scratch']
  %s0 = inlined_call_operand.hbm [shape: f32[2,512], index: 0, kind: input, shape index: {}]
  %s1 = inlined_call_operand.hbm [shape: f32[2,256], index: 1, kind: input, shape index: {}]
  %s2 = inlined_call_operand.vmem [shape: f32[2,1], index: 2, kind: output, shape index: {}]
  %s3 = sld [smem:[#allocation0]]
  $region26: #{tpu_custom_call.1} parent=0
    _
  %s5 = ssub.s32 1, %s3
  %s6 = scalar_select 0, %s5, %s3
  $region1: #{tpu_custom_call.1} parent=0
    #allocation2 [shape = 'u8[4096]{0}', space=vmem, size = 0x1000, scoped, tag = 'input window, operand 0, single buffered']
    #allocation3 [shape = 's32[1]{0}', space=sflag, size = 0x4, scoped, tag = 'scoped memory for tpu_custom_call.1']
    #allocation4 [shape = 'u8[2048]{0}', space=vmem, size = 0x800, scoped, tag = 'input window, operand 1, single buffered']
    #allocation5 [shape = 's32[1]{0}', space=sflag, size = 0x4, scoped, tag = 'scoped memory for tpu_custom_call.1']
    %7 = vsyncpa [#allocation3], 0
    %8 = vsyncpa [#allocation5], 0
    // Predicated region
    $region2: #{tpu_custom_call.1} parent=1 // pred_check
      _
    $region3: #{tpu_custom_call.1} parent=1 // pred_check_branch
      %10 = sbr.rel (0) target = $region5
    $region4: #{tpu_custom_call.1} parent=1 // pred_region
      %s12 = ssub.s32 128, 128
      %13 = vsyncadd [#allocation3], %s12
      %s15 = sshll.u32 [#allocation2], 4
      %s16 = int_to_ptr.vmem [resolvable:$true] %s15
      %18 = dma.hbm_to_vmem [thread:$0]  %s0, 128, %s16, [#allocation3]
    $region5: #{tpu_custom_call.1} parent=1 // pred_fallthru
      _
    // Predicated region
    $region6: #{tpu_custom_call.1} parent=1 // pred_check
      _
    $region7: #{tpu_custom_call.1} parent=1 // pred_check_branch
      %20 = sbr.rel (0) target = $region9
    $region8: #{tpu_custom_call.1} parent=1 // pred_region
      %s22 = ssub.s32 64, 64
      %23 = vsyncadd [#allocation5], %s22
      %s25 = sshll.u32 [#allocation4], 4
      %s26 = int_to_ptr.vmem [resolvable:$true] %s25
      %28 = dma.hbm_to_vmem [thread:$0]  %s1, 64, %s26, [#allocation5]
    $region9: #{tpu_custom_call.1} parent=1 // pred_fallthru
      _
    // Predicated region
    $region10: #{tpu_custom_call.1} parent=1 // pred_check
      _
    $region11: #{tpu_custom_call.1} parent=1 // pred_check_branch
      %30 = sbr.rel (0) target = $region13
    $region12: #{tpu_custom_call.1} parent=1 // pred_region
      %31 = dma.done [#allocation3], 128
    $region13: #{tpu_custom_call.1} parent=1 // pred_fallthru
      _
    // Predicated region
    $region14: #{tpu_custom_call.1} parent=1 // pred_check
      _
    $region15: #{tpu_custom_call.1} parent=1 // pred_check_branch
      %33 = sbr.rel (0) target = $region17
    $region16: #{tpu_custom_call.1} parent=1 // pred_region
      %34 = dma.done [#allocation5], 64
    $region17: #{tpu_custom_call.1} parent=1 // pred_fallthru
      _
    %v35 = vld [vmem:[#allocation2] sm:$0xf]
    %v36 = vld [vmem:[#allocation2 + $0x4] sm:$0xf]
    %v37 = vld [vmem:[#allocation4] sm:$0xf]
    %v38 = vsub.f32 1.0, %v37
    %v39 = vand.u32 2147483647, %v38
    %v42 = vunpack.c.l.s4 1983009808
    %v43 = vunpack.c.0.s8 %v42
    %v44 = vlaneseq
    %v45 = vshrl.u32 %v44, 7
    %v46 = vsub.s32 %v43, %v45
    %v47 = vrot.slane %v35, %v46
    %v48 = vcombine.high %v47, %v47
    %vm51 = vcmask 1041408
    %v52 = vsel %vm51, %v47, 0.0
    %v53 = vsel %vm51, %v48, 0.0
    %v54 = vadd.f32 %v52, %v53
    %55 = vadd.xlane.f32.xlu0 %v54
    %v56 = vpop.xlane.xlu0 %55
    %v59 = vunpack.c.l.s4 1983009808
    %v60 = vunpack.c.0.s8 %v59
    %v61 = vlaneseq
    %v62 = vshrl.u32 %v61, 7
    %v63 = vsub.s32 %v60, %v62
    %v64 = vrot.slane %v36, %v63
    %v65 = vcombine.high %v64, %v64
    %v68 = vsel %vm51, %v64, 0.0
    %v69 = vsel %vm51, %v65, 0.0
    %v70 = vadd.f32 %v68, %v69
    %71 = vadd.xlane.f32.xlu0 %v70
    %v72 = vpop.xlane.xlu0 %71
    %v75 = vunpack.c.l.s4 1983009808
    %v76 = vunpack.c.0.s8 %v75
    %v77 = vlaneseq
    %v78 = vshrl.u32 %v77, 7
    %v79 = vsub.s32 %v76, %v78
    %v80 = vrot.slane %v37, %v79
    %v81 = vcombine.high %v80, %v80
    %v84 = vsel %vm51, %v80, 0.0
    %v85 = vsel %vm51, %v81, 0.0
    %v86 = vadd.f32 %v84, %v85
    %87 = vadd.xlane.f32.xlu0 %v86
    %v88 = vpop.xlane.xlu0 %87
    %v91 = vunpack.c.l.s4 1983009808
    %v92 = vunpack.c.0.s8 %v91
    %v93 = vlaneseq
    %v94 = vshrl.u32 %v93, 7
    %v95 = vsub.s32 %v92, %v94
    %v96 = vrot.slane %v39, %v95
    %v97 = vcombine.high %v96, %v96
    %v100 = vsel %vm51, %v96, 0.0
    %v101 = vsel %vm51, %v97, 0.0
    %v102 = vadd.f32 %v100, %v101
    %103 = vadd.xlane.f32.xlu0 %v102
    %v104 = vpop.xlane.xlu0 %103
    %v105 = vmul.f32 %v35, %v39
    %v108 = vunpack.c.l.s4 1983009808
    %v109 = vunpack.c.0.s8 %v108
    %v110 = vlaneseq
    %v111 = vshrl.u32 %v110, 7
    %v112 = vsub.s32 %v109, %v111
    %v113 = vrot.slane %v105, %v112
    %v114 = vcombine.high %v113, %v113
    %v117 = vsel %vm51, %v113, 0.0
    %v118 = vsel %vm51, %v114, 0.0
    %v119 = vadd.f32 %v117, %v118
    %120 = vadd.xlane.f32.xlu0 %v119
    %v121 = vpop.xlane.xlu0 %120
    %v122 = vmul.f32 %v36, %v37
    %v125 = vunpack.c.l.s4 1983009808
    %v126 = vunpack.c.0.s8 %v125
    %v127 = vlaneseq
    %v128 = vshrl.u32 %v127, 7
    %v129 = vsub.s32 %v126, %v128
    %v130 = vrot.slane %v122, %v129
    %v131 = vcombine.high %v130, %v130
    %v134 = vsel %vm51, %v130, 0.0
    %v135 = vsel %vm51, %v131, 0.0
    %v136 = vadd.f32 %v134, %v135
    %137 = vadd.xlane.f32.xlu0 %v136
    %v138 = vpop.xlane.xlu0 %137
    %v139 = vmul.f32 %v121, 2.0
    %v140 = vadd.f32 %v139, 1.0
    %v141 = vadd.f32 %v56, %v104
    %v142 = vadd.f32 %v141, 1.0
    %v143 = vrcp.pop %v142
    %v144 = vmul.f32 %v140, %v143
    %v145 = vsub.f32 1.0, %v144
    %v146 = vmul.f32 %v138, 2.0
    %v147 = vadd.f32 %v146, 1.0
    %v148 = vadd.f32 %v72, %v88
    %v149 = vadd.f32 %v148, 1.0
    %v150 = vrcp.pop %v149
    %v151 = vmul.f32 %v147, %v150
    %v152 = vsub.f32 1.0, %v151
    %v153 = vadd.f32 %v145, %v152
    %vm154 = vcmask 1024
    %155 = vst.msk [vmem:[%s2] sm:$0x3] %vm154, %v153
    // Predicated region
    $region18: #{tpu_custom_call.1} parent=1 // pred_check
      _
    $region19: #{tpu_custom_call.1} parent=1 // pred_check_branch
      %157 = sbr.rel (0) target = $region21
    $region20: #{tpu_custom_call.1} parent=1 // pred_region
      _
    $region21: #{tpu_custom_call.1} parent=1 // pred_fallthru
      _
    // Predicated region
    $region22: #{tpu_custom_call.1} parent=1 // pred_check
      _
    $region23: #{tpu_custom_call.1} parent=1 // pred_check_branch
      %159 = sbr.rel (0) target = $region25
    $region24: #{tpu_custom_call.1} parent=1 // pred_region
      _
    $region25: #{tpu_custom_call.1} parent=1 // pred_fallthru
      _
    %160 = vsyncpa [#allocation3], 1
    %161 = vsyncpa [#allocation5], 1

</llo_original>
